<compile_context>
chip_gen: v7x
topology: tpu7x:2x2x1
jax: 0.10.0
libtpu: 0.0.40
codegen_flags: <defaults>
</compile_context>

<pallas_src>
import math
import functools

import jax
import jax.numpy as jnp
from jax.experimental import pallas as pl
from jax.experimental.pallas import tpu as pltpu

_NEG_INF = -1e30  # large finite negative: avoids exp(-inf - (-inf)) NaNs when tiling


def _qkv_proj_kernel(x_ref, wqkv_ref, bqkv_ref, q_ref, k_ref, v_ref, *,
                     emb: int, scale: float):
    """Row-tiled fused QKV projection; q is pre-scaled by 1/sqrt(head_dim)."""
    x = x_ref[...]                                              # (tr, C), compute dtype
    qkv = jnp.dot(x, wqkv_ref[...], preferred_element_type=jnp.float32)
    qkv = qkv + bqkv_ref[...]                                   # (tr, 3C), f32
    # Fold the attention scale into q here (T*C multiplies once, not (T,T) per tile).
    q_ref[...] = (qkv[:, 0 * emb:1 * emb] * scale).astype(q_ref.dtype)
    k_ref[...] = qkv[:, 1 * emb:2 * emb].astype(k_ref.dtype)
    v_ref[...] = qkv[:, 2 * emb:3 * emb].astype(v_ref.dtype)


def _flash_attn_kernel(q_ref, k_ref, v_ref, wproj_ref, bproj_ref, o_ref,
                       m_ref, l_ref, acc_ref, *, tq: int, tk: int,
                       n_head: int, head_dim: int, compute_dtype):
    """Flash attention (online softmax) + fused output projection.

    Blocks: q_ref (1, tq, C), k_ref/v_ref (1, tk, C), o_ref (1, tq, C).
    Scratch: m_ref/l_ref (H, tq, 1) f32, acc_ref (H, tq, hd) f32.
    Heads are split in-VMEM (lane slices) so q/k/v stay lane-dense (B, T, C) in HBM.
    """
    qi = pl.program_id(1)   # query-tile index
    ki = pl.program_id(2)   # kv-tile index (innermost, "arbitrary")

    @pl.when(ki == 0)
    def _init():
        m_ref[...] = jnp.full_like(m_ref, _NEG_INF)
        l_ref[...] = jnp.zeros_like(l_ref)
        acc_ref[...] = jnp.zeros_like(acc_ref)

    def split_heads(x2d):
        # (t, C) -> (H, t, hd) via static lane slices (no jnp.transpose needed).
        return jnp.stack(
            [x2d[:, h * head_dim:(h + 1) * head_dim] for h in range(n_head)], axis=0)

    def step(masked: bool):
        qh = split_heads(q_ref[0])                              # (H, tq, hd)
        kh = split_heads(k_ref[0])                              # (H, tk, hd)
        vh = split_heads(v_ref[0])                              # (H, tk, hd)

        # All heads in one NT contraction over head_dim; f32 accumulation on the MXU.
        s = jnp.einsum('hqd,hkd->hqk', qh, kh,
                       preferred_element_type=jnp.float32)      # (H, tq, tk) f32

        if masked:
            # Diagonal tile only: with tq == tk and qi == ki the causal condition
            # reduces to the local lower-triangular r >= c.
            r = jax.lax.broadcasted_iota(jnp.int32, (tq, tk), 0)
            c = jax.lax.broadcasted_iota(jnp.int32, (tq, tk), 1)
            s = jnp.where((r >= c)[None, :, :], s, _NEG_INF)

        # Online softmax update; statistics stay in f32.
        m_prev = m_ref[...]                                     # (H, tq, 1)
        m_new = jnp.maximum(m_prev, jnp.max(s, axis=-1, keepdims=True))
        alpha = jnp.exp(m_prev - m_new)
        p = jnp.exp(s - m_new)                                  # (H, tq, tk) f32
        l_ref[...] = alpha * l_ref[...] + jnp.sum(p, axis=-1, keepdims=True)
        pv = jnp.einsum('hqk,hkd->hqd', p.astype(compute_dtype), vh,
                        preferred_element_type=jnp.float32)     # (H, tq, hd)
        acc_ref[...] = alpha * acc_ref[...] + pv
        m_ref[...] = m_new

    # Interior tiles (fully visible): no iota / compare / select.
    @pl.when(ki < qi)
    def _interior():
        step(masked=False)

    # Diagonal tile: masked update, then normalize + merge heads + fused output
    # projection + lane-dense (tq, C) store.  Tiles with ki > qi do nothing (and
    # their DMA is already elided by the clamped index_map).
    @pl.when(ki == qi)
    def _diag_and_epilogue():
        step(masked=True)

        inv_l = pl.reciprocal(l_ref[...], approx=True)          # EUP vrcp, ~free
        y = (acc_ref[...] * inv_l).astype(compute_dtype)        # (H, tq, hd)
        # Head merge: (H, tq, hd) -> (tq, C) via lane-dim concat of per-head slices,
        # then one C-deep matmul against the un-reshaped projection weight.
        y_cat = jnp.concatenate([y[h] for h in range(n_head)], axis=-1)   # (tq, C)
        out = jnp.dot(y_cat, wproj_ref[...],
                      preferred_element_type=jnp.float32) + bproj_ref[...]
        o_ref[0] = out.astype(o_ref.dtype)


def _fit_tile(n: int, target: int) -> int:
    """Largest divisor of n that is <= target."""
    t = max(1, min(target, n))
    while n % t:
        t -= 1
    return t


def causal_attention(x, w_qkv, b_qkv, w_proj, b_proj, *, n_head: int,
                     attn_tile: int = 256, row_tile: int = 512,
                     compute_dtype=jnp.bfloat16):
    B, T, C = x.shape
    assert C % n_head == 0
    hd = C // n_head
    scale = 1.0 / math.sqrt(hd)

    # TODO(synk): allow tq != tk (epilogue condition becomes ki == (qi*tq+tq-1)//tk).
    tq = tk = _fit_tile(T, attn_tile)

    rows = B * T
    tr = _fit_tile(rows, row_tile)

    cd = compute_dtype
    # bf16 MXU operands (f32 accumulation via preferred_element_type); biases in f32.
    x_flat = x.reshape(rows, C).astype(cd)          # free reshape (leading dims only)
    w_qkv_c = w_qkv.astype(cd)
    b_qkv_f = b_qkv.astype(jnp.float32)
    w_proj_c = w_proj.astype(cd)
    b_proj_f = b_proj.astype(jnp.float32)

    vmem_limit = 48 * 1024 * 1024   # generous on v5e/v6e, still < v7x's 64 MiB physical

    # ---- kernel 1: fused QKV projection (q pre-scaled), lane-dense (rows, C) outputs ----
    # TODO(synk): for very large C on v7x (64 MiB VMEM), tile w_qkv over its 3C output
    # columns with an extra grid axis instead of pinning it whole in VMEM.
    qkv_kernel = functools.partial(_qkv_proj_kernel, emb=C, scale=scale)
    q, k, v = pl.pallas_call(
        qkv_kernel,
        out_shape=(
            jax.ShapeDtypeStruct((rows, C), cd),
            jax.ShapeDtypeStruct((rows, C), cd),
            jax.ShapeDtypeStruct((rows, C), cd),
        ),
        grid_spec=pltpu.PrefetchScalarGridSpec(
            num_scalar_prefetch=0,
            grid=(rows // tr,),
            in_specs=[
                pl.BlockSpec((tr, C), lambda i: (i, 0)),               # x row tile
                pl.BlockSpec(memory_space=pltpu.MemorySpace.VMEM),     # w_qkv (1 copy)
                pl.BlockSpec(memory_space=pltpu.MemorySpace.VMEM),     # b_qkv (1 copy)
            ],
            out_specs=(
                pl.BlockSpec((tr, C), lambda i: (i, 0)),
                pl.BlockSpec((tr, C), lambda i: (i, 0)),
                pl.BlockSpec((tr, C), lambda i: (i, 0)),
            ),
        ),
        compiler_params=pltpu.CompilerParams(
            dimension_semantics=("parallel",),
            vmem_limit_bytes=vmem_limit,
        ),
    )(x_flat, w_qkv_c, b_qkv_f)

    # Free reshapes back to (B, T, C): no head-major HBM round-trip, no XLA transpose.
    q3 = q.reshape(B, T, C)
    k3 = k.reshape(B, T, C)
    v3 = v.reshape(B, T, C)

    # ---- kernel 2: flash attention (online softmax) + fused output projection ----
    # k/v block index is clamped to min(j, i): tiles above the causal diagonal are
    # neither computed nor re-DMA'd.
    # TODO(synk): for long T, replace the rectangular (qi, ki) grid with a
    # scalar-prefetched triangular grid so the clamped (dead) grid steps disappear too.
    # TODO(synk): try pipeline_mode=pl.Buffered(3) on k/v if DMA shows exposed in traces.
    attn_kernel = functools.partial(_flash_attn_kernel, tq=tq, tk=tk,
                                    n_head=n_head, head_dim=hd, compute_dtype=cd)
    out = pl.pallas_call(
        attn_kernel,
        out_shape=jax.ShapeDtypeStruct((B, T, C), x.dtype),
        grid_spec=pltpu.PrefetchScalarGridSpec(
            num_scalar_prefetch=0,
            grid=(B, T // tq, T // tk),
            in_specs=[
                pl.BlockSpec((1, tq, C), lambda b, i, j: (b, i, 0)),                  # q
                pl.BlockSpec((1, tk, C), lambda b, i, j: (b, jnp.minimum(j, i), 0)),  # k
                pl.BlockSpec((1, tk, C), lambda b, i, j: (b, jnp.minimum(j, i), 0)),  # v
                pl.BlockSpec(memory_space=pltpu.MemorySpace.VMEM),   # w_proj (C, C)
                pl.BlockSpec(memory_space=pltpu.MemorySpace.VMEM),   # b_proj
            ],
            out_specs=pl.BlockSpec((1, tq, C), lambda b, i, j: (b, i, 0)),
            scratch_shapes=[
                pltpu.VMEM((n_head, tq, 1), jnp.float32),    # running max  m
                pltpu.VMEM((n_head, tq, 1), jnp.float32),    # running denom l
                pltpu.VMEM((n_head, tq, hd), jnp.float32),   # output accumulator
            ],
        ),
        compiler_params=pltpu.CompilerParams(
            dimension_semantics=("parallel", "parallel", "arbitrary"),
            vmem_limit_bytes=vmem_limit,
        ),
    )(q3, k3, v3, w_proj_c, b_proj_f)
    return out


def _reference(x, w_qkv, b_qkv, w_proj, b_proj, n_head):
    # Pure-JAX f32 reference matching PyTorch F.scaled_dot_product_attention(is_causal=True).
    B, T, C = x.shape
    hd = C // n_head
    qkv = x @ w_qkv + b_qkv[0]
    q, k, v = jnp.split(qkv, 3, axis=-1)
    def to_heads(t):
        return t.reshape(B, T, n_head, hd).transpose(0, 2, 1, 3)   # (B, H, T, hd)
    q, k, v = to_heads(q), to_heads(k), to_heads(v)
    s = jnp.einsum('bhqd,bhkd->bhqk', q, k) / math.sqrt(hd)
    mask = jnp.tril(jnp.ones((T, T), dtype=bool))
    s = jnp.where(mask[None, None], s, -jnp.inf)
    p = jax.nn.softmax(s, axis=-1)
    y = jnp.einsum('bhqk,bhkd->bhqd', p, v)
    y = y.transpose(0, 2, 1, 3).reshape(B, T, C)
    return y @ w_proj + b_proj[0]


if __name__ == "__main__":
    def run_case(B, T, C, n_head, key):
        kx, k1, k2, k3, k4 = jax.random.split(key, 5)
        x = jax.random.normal(kx, (B, T, C), dtype=jnp.float32)
        # Deterministic PyTorch-Linear-style uniform init, stored as (in, out).
        bound = 1.0 / math.sqrt(C)
        w_qkv = jax.random.uniform(k1, (C, 3 * C), jnp.float32, -bound, bound)
        b_qkv = jax.random.uniform(k2, (1, 3 * C), jnp.float32, -bound, bound)
        w_proj = jax.random.uniform(k3, (C, C), jnp.float32, -bound, bound)
        b_proj = jax.random.uniform(k4, (1, C), jnp.float32, -bound, bound)

        y = causal_attention(x, w_qkv, b_qkv, w_proj, b_proj, n_head=n_head)
        y = jax.block_until_ready(y)

        y_ref = _reference(x, w_qkv, b_qkv, w_proj, b_proj, n_head)
        assert y.shape == (B, T, C)
        # bf16 MXU operands with f32 accumulation -> small drift vs the f32 reference.
        assert jnp.allclose(y, y_ref, atol=2.5e-2, rtol=2.5e-2), \
            f"mismatch vs pure-JAX f32 reference at shape {(B, T, C, n_head)}"

    key = jax.random.PRNGKey(0)
    key_small, key_big = jax.random.split(key)

    # Toy config from the module spec: n_embd=32, n_head=4, block_size=8, (B,T,C)=(2,8,32).
    run_case(2, 8, 32, 4, key_small)
    # Multi-tile shape exercising the (8,128) tiling paths, the clamped kv index_map,
    # the mask-free interior branch, and the masked diagonal epilogue (grid (2,2,2)).
    run_case(2, 512, 128, 4, key_big)

    print("KERNEL_OK")
</pallas_src>

<mosaic_0001>
module attributes {stable_mosaic.version = 11 : i64} {
  func.func @_qkv_proj_kernel(%arg0: i32, %arg1: memref<16x32xbf16, #tpu.memory_space<vmem>>, %arg2: memref<32x96xbf16, #tpu.memory_space<vmem>>, %arg3: memref<1x96xf32, #tpu.memory_space<vmem>>, %arg4: memref<16x32xbf16, #tpu.memory_space<vmem>>, %arg5: memref<16x32xbf16, #tpu.memory_space<vmem>>, %arg6: memref<16x32xbf16, #tpu.memory_space<vmem>>) attributes {dimension_semantics = [#tpu.dimension_semantics<parallel>], iteration_bounds = array<i64: 1>, scalar_prefetch = 0 : i64, scratch_operands = 0 : i64, tpu.core_type = #tpu.core_type<tc>, window_params = [{transform_indices = @transform_0, window_bounds = array<i64: 16, 32>}, {pipeline_mode = #tpu.pipeline_mode<synchronous>, transform_indices = @transform_1, window_bounds = array<i64: 32, 96>}, {pipeline_mode = #tpu.pipeline_mode<synchronous>, transform_indices = @transform_2, window_bounds = array<i64: 1, 96>}, {transform_indices = @transform_3, window_bounds = array<i64: 16, 32>}, {transform_indices = @transform_4, window_bounds = array<i64: 16, 32>}, {transform_indices = @transform_5, window_bounds = array<i64: 16, 32>}]} {
    %c0 = arith.constant 0 : index
    %c0_0 = arith.constant 0 : index
    %0 = vector.load %arg1[%c0, %c0_0] : memref<16x32xbf16, #tpu.memory_space<vmem>>, vector<16x32xbf16>
    %c0_1 = arith.constant 0 : index
    %c0_2 = arith.constant 0 : index
    %1 = vector.load %arg2[%c0_1, %c0_2] : memref<32x96xbf16, #tpu.memory_space<vmem>>, vector<32x96xbf16>
    %cst = arith.constant dense<0.000000e+00> : vector<16x96xf32>
    %2 = tpu.matmul %0, %1, %cst {dimension_numbers = #tpu.dot_dimension_numbers<[1], [0], [0], [1], [0, 0, 1, 1], [], []>} : vector<16x32xbf16>, vector<32x96xbf16>, vector<16x96xf32> -> vector<16x96xf32>
    %c0_3 = arith.constant 0 : index
    %c0_4 = arith.constant 0 : index
    %3 = vector.load %arg3[%c0_3, %c0_4] : memref<1x96xf32, #tpu.memory_space<vmem>>, vector<1x96xf32>
    %4 = vector.broadcast %3 : vector<1x96xf32> to vector<16x96xf32>
    %5 = arith.addf %2, %4 : vector<16x96xf32>
    %6 = vector.extract_strided_slice %5 {offsets = [0, 0], sizes = [16, 32], strides = [1, 1]} : vector<16x96xf32> to vector<16x32xf32>
    %cst_5 = arith.constant 0.353553385 : f32
    %7 = vector.broadcast %cst_5 : f32 to vector<16x32xf32>
    %8 = arith.mulf %6, %7 : vector<16x32xf32>
    %9 = arith.truncf %8 : vector<16x32xf32> to vector<16x32xbf16>
    %c0_6 = arith.constant 0 : index
    %c0_7 = arith.constant 0 : index
    %10 = vector.load %arg4[%c0_6, %c0_7] : memref<16x32xbf16, #tpu.memory_space<vmem>>, vector<16x32xbf16>
    tpu.vector_store %arg4[%c0_6, %c0_7], %9 {strides = array<i32>} : memref<16x32xbf16, #tpu.memory_space<vmem>>, vector<16x32xbf16>,
    %11 = vector.extract_strided_slice %5 {offsets = [0, 32], sizes = [16, 32], strides = [1, 1]} : vector<16x96xf32> to vector<16x32xf32>
    %12 = arith.truncf %11 : vector<16x32xf32> to vector<16x32xbf16>
    %c0_8 = arith.constant 0 : index
    %c0_9 = arith.constant 0 : index
    %13 = vector.load %arg5[%c0_8, %c0_9] : memref<16x32xbf16, #tpu.memory_space<vmem>>, vector<16x32xbf16>
    tpu.vector_store %arg5[%c0_8, %c0_9], %12 {strides = array<i32>} : memref<16x32xbf16, #tpu.memory_space<vmem>>, vector<16x32xbf16>,
    %14 = vector.extract_strided_slice %5 {offsets = [0, 64], sizes = [16, 32], strides = [1, 1]} : vector<16x96xf32> to vector<16x32xf32>
    %15 = arith.truncf %14 : vector<16x32xf32> to vector<16x32xbf16>
    %c0_10 = arith.constant 0 : index
    %c0_11 = arith.constant 0 : index
    %16 = vector.load %arg6[%c0_10, %c0_11] : memref<16x32xbf16, #tpu.memory_space<vmem>>, vector<16x32xbf16>
    tpu.vector_store %arg6[%c0_10, %c0_11], %15 {strides = array<i32>} : memref<16x32xbf16, #tpu.memory_space<vmem>>, vector<16x32xbf16>,
    return
  }
  func.func @transform_0(%arg0: i32) -> (i32, i32) {
    %c0_i32 = arith.constant 0 : i32
    %c0_i32_0 = arith.constant 0 : i32
    return %arg0, %c0_i32 : i32, i32
  }
  func.func @transform_1(%arg0: i32) -> (i32, i32) {
    %c0_i32 = arith.constant 0 : i32
    %c0_i32_0 = arith.constant 0 : i32
    %c0_i32_1 = arith.constant 0 : i32
    return %c0_i32, %c0_i32_0 : i32, i32
  }
  func.func @transform_2(%arg0: i32) -> (i32, i32) {
    %c0_i32 = arith.constant 0 : i32
    %c0_i32_0 = arith.constant 0 : i32
    %c0_i32_1 = arith.constant 0 : i32
    return %c0_i32, %c0_i32_0 : i32, i32
  }
  func.func @transform_3(%arg0: i32) -> (i32, i32) {
    %c0_i32 = arith.constant 0 : i32
    %c0_i32_0 = arith.constant 0 : i32
    return %arg0, %c0_i32 : i32, i32
  }
  func.func @transform_4(%arg0: i32) -> (i32, i32) {
    %c0_i32 = arith.constant 0 : i32
    %c0_i32_0 = arith.constant 0 : i32
    return %arg0, %c0_i32 : i32, i32
  }
  func.func @transform_5(%arg0: i32) -> (i32, i32) {
    %c0_i32 = arith.constant 0 : i32
    %c0_i32_0 = arith.constant 0 : i32
    return %arg0, %c0_i32 : i32, i32
  }
}

</mosaic_0001>

<llo_original>
// kernel: tpu_custom_call.1
$region0: #{tpu_custom_call.1}
  #allocation0 [shape = 'u32[]', space=smem, size = 0x4, offset = 0x4, fixed_abs, tag = 'smem constant byte address 0x4 - core index']
  #allocation1 [shape = 'u32[144,128]{1,0:T(1,128)}', space=vmem, size = 0x12000, scoped, tag = 'internal scratch']
  %s0 = inlined_call_operand.hbm [shape: bf16[16,32], index: 0, kind: input, shape index: {}]
  %s1 = inlined_call_operand.hbm [shape: bf16[32,96], index: 1, kind: input, shape index: {}]
  %s2 = inlined_call_operand.vmem [shape: f32[1,96], index: 2, kind: input, shape index: {}]
  %s3 = inlined_call_operand.hbm [shape: bf16[16,32], index: 3, kind: output, shape index: {0}]
  %s4 = inlined_call_operand.hbm [shape: bf16[16,32], index: 4, kind: output, shape index: {1}]
  %s5 = inlined_call_operand.hbm [shape: bf16[16,32], index: 5, kind: output, shape index: {2}]
  %6 = xla_tuple %s3, %s4, %s5
  %s7 = sld [smem:[#allocation0]]
  $region46: #{tpu_custom_call.1} parent=0
    _
  %s9 = ssub.s32 1, %s7
  %s10 = scalar_select 0, %s9, %s7
  $region1: #{tpu_custom_call.1} parent=0
    #allocation2 [shape = 'u8[4096]{0}', space=vmem, size = 0x1000, scoped, tag = 'input window, operand 0, single buffered']
    #allocation3 [shape = 's32[1]{0}', space=sflag, size = 0x4, scoped, tag = 'scoped memory for tpu_custom_call.1']
    #allocation4 [shape = 's32[1]{0}', space=sflag, size = 0x4, scoped, tag = 'scoped memory for tpu_custom_call.1']
    #allocation5 [shape = 'u8[8192]{0}', space=vmem, size = 0x2000, scoped, tag = 'input window, operand 1, single buffered']
    #allocation6 [shape = 's32[1]{0}', space=sflag, size = 0x4, scoped, tag = 'scoped memory for tpu_custom_call.1']
    #allocation7 [shape = 'u8[4096]{0}', space=vmem, size = 0x1000, scoped, tag = 'output window, operand 0, single buffered']
    #allocation8 [shape = 'u8[4096]{0}', space=vmem, size = 0x1000, scoped, tag = 'output window, operand 1, single buffered']
    #allocation9 [shape = 's32[1]{0}', space=sflag, size = 0x4, scoped, tag = 'scoped memory for tpu_custom_call.1']
    #allocation10 [shape = 'u8[4096]{0}', space=vmem, size = 0x1000, scoped, tag = 'output window, operand 2, single buffered']
    %11 = vsyncpa [#allocation3], 0
    %12 = vsyncpa [#allocation6], 0
    %13 = vsyncpa [#allocation4], 0
    %14 = vsyncpa [#allocation9], 0
    // Predicated region
    $region2: #{tpu_custom_call.1} parent=1 // pred_check
      _
    $region3: #{tpu_custom_call.1} parent=1 // pred_check_branch
      %16 = sbr.rel (0) target = $region5
    $region4: #{tpu_custom_call.1} parent=1 // pred_region
      %s18 = ssub.s32 128, 128
      %19 = vsyncadd [#allocation3], %s18
      %s20 = sshll.u32 [#allocation2], 4
      %s21 = int_to_ptr.vmem [resolvable:$true] %s20
      %26 = dma.hbm_to_vmem [thread:$0]  %s0, 128, %s21, [#allocation3], 64, 64, 4
    $region5: #{tpu_custom_call.1} parent=1 // pred_fallthru
      _
    // Predicated region
    $region6: #{tpu_custom_call.1} parent=1 // pred_check
      _
    $region7: #{tpu_custom_call.1} parent=1 // pred_check_branch
      %28 = sbr.rel (0) target = $region9
    $region8: #{tpu_custom_call.1} parent=1 // pred_region
      %s30 = ssub.s32 256, 256
      %31 = vsyncadd [#allocation6], %s30
      %s32 = sshll.u32 [#allocation5], 4
      %s33 = int_to_ptr.vmem [resolvable:$true] %s32
      %38 = dma.hbm_to_vmem [thread:$0]  %s1, 256, %s33, [#allocation6], 64, 64, 4
    $region9: #{tpu_custom_call.1} parent=1 // pred_fallthru
      _
    // Predicated region
    $region10: #{tpu_custom_call.1} parent=1 // pred_check
      _
    $region11: #{tpu_custom_call.1} parent=1 // pred_check_branch
      %40 = sbr.rel (0) target = $region13
    $region12: #{tpu_custom_call.1} parent=1 // pred_region
      _
    $region13: #{tpu_custom_call.1} parent=1 // pred_fallthru
      _
    // Predicated region
    $region14: #{tpu_custom_call.1} parent=1 // pred_check
      _
    $region15: #{tpu_custom_call.1} parent=1 // pred_check_branch
      %42 = sbr.rel (0) target = $region17
    $region16: #{tpu_custom_call.1} parent=1 // pred_region
      %43 = dma.done [#allocation3], 128
    $region17: #{tpu_custom_call.1} parent=1 // pred_fallthru
      _
    // Predicated region
    $region18: #{tpu_custom_call.1} parent=1 // pred_check
      _
    $region19: #{tpu_custom_call.1} parent=1 // pred_check_branch
      %45 = sbr.rel (0) target = $region21
    $region20: #{tpu_custom_call.1} parent=1 // pred_region
      %46 = dma.done [#allocation6], 256
    $region21: #{tpu_custom_call.1} parent=1 // pred_fallthru
      _
    %v48 = vld [vmem:[#allocation2] sm:$0xf]
    %v49 = vld [vmem:[#allocation2 + $0x4] sm:$0xf]
    %v50 = vld [vmem:[#allocation5] sm:$0xf]
    %v51 = vld [vmem:[#allocation5 + $0x4] sm:$0xf]
    %v52 = vld [vmem:[#allocation5 + $0x8] sm:$0xf]
    %v53 = vld [vmem:[#allocation5 + $0xc] sm:$0xf]
    %v54 = vld [vmem:[%s2] sm:$0x1]
    %v56 = vlaneseq
    %v57 = vshrl.u32 %v56, 7
    %v58 = vsub.s32 0, %v57
    %v59 = vrot.slane %v54, %v58
    %v63 = vunpack.c.l.b16 %v48
    %v64 = vunpack.c.l.b16 %v49
    %v65 = vpack.c.b16 %v64, %v63
    %v70 = vunpack.c.l.b16 %v50
    %v71 = vunpack.c.l.b16 %v51
    %v72 = vunpack.c.l.b16 %v52
    %v73 = vunpack.c.l.b16 %v53
    %v74 = vpack.c.b16 %v71, %v70
    %v75 = vpack.c.b16 %v73, %v72
    %vm78 = vcmask 261120
    %v80 = vsel %vm78, %v65, 0
    %82 = vmatprep.subr.bf16.mxu0 0
    %83 = vmatpush1.bf16.msra.mxu0 %v74
    %84 = vmatprep.subr.bf16.mxu0 0
    %85 = vmatpush1.bf16.msra.mxu0 %v75
    %86 = vmatprep.subr.bf16.mxu0 0
    %87 = vmatpush1.bf16.msra.mxu0 0
    %88 = vmatprep.subr.bf16.mxu0 0
    %89 = vmatpush1.bf16.msra.mxu0 0
    %90 = vmatprep.subr.bf16.mxu0 0
    %91 = vmatpush1.bf16.msra.mxu0 0
    %92 = vmatprep.subr.bf16.mxu0 0
    %93 = vmatpush1.bf16.msra.mxu0 0
    %94 = vmatprep.subr.bf16.mxu0 0
    %95 = vmatpush1.bf16.msra.mxu0 0
    %96 = vmatprep.subr.bf16.mxu0 0
    %97 = vmatpush1.bf16.msra.mxu0 0
    %98 = vmatprep.subr.bf16.mxu0 0
    %99 = vmatpush1.bf16.msra.mxu0 0
    %100 = vmatprep.subr.bf16.mxu0 0
    %101 = vmatpush1.bf16.msra.mxu0 0
    %102 = vmatprep.subr.bf16.mxu0 0
    %103 = vmatpush1.bf16.msra.mxu0 0
    %104 = vmatprep.subr.bf16.mxu0 0
    %105 = vmatpush1.bf16.msra.mxu0 0
    %106 = vmatprep.subr.bf16.mxu0 0
    %107 = vmatpush1.bf16.msra.mxu0 0
    %108 = vmatprep.subr.bf16.mxu0 0
    %109 = vmatpush1.bf16.msra.mxu0 0
    %110 = vmatprep.subr.bf16.mxu0 0
    %111 = vmatpush1.bf16.msra.mxu0 0
    %112 = vmatprep.subr.bf16.mxu0 0
    %113 = vmatpush1.bf16.msra.mxu0 0
    %114 = vmatprep.mubr.bf16.mxu0 0
    %115 = vmatmul.mubr.bf16.gmra.mrb[0].mxu0 %v80
    %v116 = vpop.f32.mrb[0].mxu0
    %v117 = vadd.f32 %v59, %v116
    %v118 = vpop.f32.mrb[0].mxu0
    %v119 = vpop.f32.mrb[0].mxu0
    %v120 = vadd.f32 %v59, %v119
    %v121 = vpop.f32.mrb[0].mxu0
    %122 = vdwg.mxu0
    %v123 = vmul.f32 %v117, 0.35355338
    %v124 = vmul.f32 %v120, 0.35355338
    %v125 = vpack.c.bf16 %v124, %v123
    %v127 = vunpack.c.l.b16 %v125
    %v128 = vunpack.c.h.b16 %v125
    %v129 = vpack.c.b16 %v127, %v127
    %v130 = vpack.c.b16 %v128, %v128
    %vm133 = vcmask 257024
    %134 = vst.msk [vmem:[#allocation7] sm:$0xf] %vm133, %v129
    %135 = vst.msk [vmem:[#allocation7 + $0x4] sm:$0xf] %vm133, %v130
    %v136 = vpack.c.bf16 %v120, %v117
    %v138 = vunpack.c.l.b16 %v136
    %v139 = vunpack.c.h.b16 %v136
    %v140 = vpack.c.b16 %v138, %v138
    %v141 = vpack.c.b16 %v139, %v139
    %142 = vrot.lane.b32.xlu0 %v140, 96
    %v143 = vpop.permute.xlu0 %142
    %144 = vrot.lane.b32.xlu0 %v141, 96
    %v145 = vpop.permute.xlu0 %144
    %148 = vst.msk [vmem:[#allocation8] sm:$0xf] %vm133, %v143
    %149 = vst.msk [vmem:[#allocation8 + $0x4] sm:$0xf] %vm133, %v145
    %150 = vrot.lane.b32.xlu0 %v140, 64
    %v151 = vpop.permute.xlu0 %150
    %152 = vrot.lane.b32.xlu0 %v141, 64
    %v153 = vpop.permute.xlu0 %152
    %156 = vst.msk [vmem:[#allocation10] sm:$0xf] %vm133, %v151
    %157 = vst.msk [vmem:[#allocation10 + $0x4] sm:$0xf] %vm133, %v153
    // Predicated region
    $region22: #{tpu_custom_call.1} parent=1 // pred_check
      _
    $region23: #{tpu_custom_call.1} parent=1 // pred_check_branch
      %159 = sbr.rel (0) target = $region25
    $region24: #{tpu_custom_call.1} parent=1 // pred_region
      %s161 = ssub.s32 128, 128
      %162 = vsyncadd [#allocation4], %s161
      %s163 = sshll.u32 [#allocation7], 4
      %s164 = int_to_ptr.vmem [resolvable:$true] %s163
      %169 = dma.vmem_to_hbm [thread:$0]  %s164, 128, %s3, [#allocation4], 64, 64, 4
    $region25: #{tpu_custom_call.1} parent=1 // pred_fallthru
      _
    // Predicated region
    $region26: #{tpu_custom_call.1} parent=1 // pred_check
      _
    $region27: #{tpu_custom_call.1} parent=1 // pred_check_branch
      %171 = sbr.rel (0) target = $region29
    $region28: #{tpu_custom_call.1} parent=1 // pred_region
      %s173 = ssub.s32 128, 128
      %174 = vsyncadd [#allocation9], %s173
      %s175 = sshll.u32 [#allocation8], 4
      %s176 = int_to_ptr.vmem [resolvable:$true] %s175
      %181 = dma.vmem_to_hbm [thread:$0]  %s176, 128, %s4, [#allocation9], 64, 64, 4
    $region29: #{tpu_custom_call.1} parent=1 // pred_fallthru
      _
    // Predicated region
    $region30: #{tpu_custom_call.1} parent=1 // pred_check
      _
    $region31: #{tpu_custom_call.1} parent=1 // pred_check_branch
      %183 = sbr.rel (0) target = $region33
    $region32: #{tpu_custom_call.1} parent=1 // pred_region
      %s185 = ssub.s32 128, 128
      %186 = vsyncadd [#allocation9], %s185
      %s187 = sshll.u32 [#allocation10], 4
      %s188 = int_to_ptr.vmem [resolvable:$true] %s187
      %193 = dma.vmem_to_hbm [thread:$0]  %s188, 128, %s5, [#allocation9], 64, 64, 4
    $region33: #{tpu_custom_call.1} parent=1 // pred_fallthru
      _
    // Predicated region
    $region34: #{tpu_custom_call.1} parent=1 // pred_check
      _
    $region35: #{tpu_custom_call.1} parent=1 // pred_check_branch
      %195 = sbr.rel (0) target = $region37
    $region36: #{tpu_custom_call.1} parent=1 // pred_region
      %196 = dma.done [#allocation4], 128
    $region37: #{tpu_custom_call.1} parent=1 // pred_fallthru
      _
    // Predicated region
    $region38: #{tpu_custom_call.1} parent=1 // pred_check
      _
    $region39: #{tpu_custom_call.1} parent=1 // pred_check_branch
      %198 = sbr.rel (0) target = $region41
    $region40: #{tpu_custom_call.1} parent=1 // pred_region
      %199 = dma.done [#allocation9], 128
    $region41: #{tpu_custom_call.1} parent=1 // pred_fallthru
      _
    // Predicated region
    $region42: #{tpu_custom_call.1} parent=1 // pred_check
      _
    $region43: #{tpu_custom_call.1} parent=1 // pred_check_branch
      %201 = sbr.rel (0) target = $region45
    $region44: #{tpu_custom_call.1} parent=1 // pred_region
      %202 = dma.done [#allocation9], 128
    $region45: #{tpu_custom_call.1} parent=1 // pred_fallthru
      _
    %203 = vsyncpa [#allocation3], 1
    %204 = vsyncpa [#allocation6], 1
    %205 = vsyncpa [#allocation4], 1
    %206 = vsyncpa [#allocation9], 1

</llo_original>
